<compile_context>
chip_gen: v7x
topology: tpu7x:2x2x1
jax: 0.10.0
libtpu: 0.0.40
codegen_flags: <defaults>
</compile_context>

<pallas_src>
import jax
import jax.numpy as jnp
from jax.experimental import pallas as pl
from jax.experimental.pallas import tpu as pltpu

IN_SIZE = 110
H1 = 150
H2 = 70
OUT_SIZE = 13
N_DEPTH = 4
N_LAYERS = 3 + N_DEPTH          # h1, h2, 4 x h3, h4 = 7 Linear layers

# Lane-aligned padded feature widths (output side of each layer).
H1_P = 256                       # 150 -> 256
H2_P = 128                       # 70  -> 128
OUT_P = 128                      # 13  -> 128 (lane-dense output block)


def _round_up(x, m):
    return ((x + m - 1) // m) * m


def _cdiv(a, b):
    return (a + b - 1) // b


def _mlp_kernel(s_ref, w0_ref, w1_ref, wr_ref, b_ref, out_ref):
    """One batch tile through the whole MLP.

    s_ref:   (tb, 110)           activation tile (pipelined over the grid)
    w0_ref:  (110, 256)          layer 0 weight (cols zero-padded past 150)
    w1_ref:  (256, 128)          layer 1 weight (rows zero-padded past 150)
    wr_ref:  (5, 128, 128)       layers 2..6 weights (zero-padded past 70/13)
    b_ref:   (7, 256) float32    per-layer biases, zero-padded
    out_ref: (tb, 128)           lane-dense output tile
    """
    cdt = w0_ref.dtype            # compute/operand dtype (f32 or bf16)
    f32 = jnp.float32

    x = s_ref[...]                                            # (tb, 110)

    # Layer 0: 110 -> 150 (padded to 256).  Mosaic pads/masks the K=110 dim.
    y = jnp.dot(x, w0_ref[...], preferred_element_type=f32)
    y = y + b_ref[0:1, :]                                     # (1, 256) f32
    x = jnp.maximum(y, 0.0).astype(cdt)                       # (tb, 256)

    # Layer 1: 150 -> 70 (256 -> 128); zero weight rows kill the pad lanes.
    y = jnp.dot(x, w1_ref[...], preferred_element_type=f32)
    y = y + b_ref[1:2, :H2_P]
    x = jnp.maximum(y, 0.0).astype(cdt)                       # (tb, 128)

    # Layers 2..5: 70 -> 70 hidden (ReLU); layer 6: 70 -> 13 output (no ReLU).
    for li in range(N_DEPTH + 1):
        y = jnp.dot(x, wr_ref[li], preferred_element_type=f32)
        y = y + b_ref[2 + li:3 + li, :H2_P]
        if li < N_DEPTH:
            x = jnp.maximum(y, 0.0).astype(cdt)
        else:
            out_ref[...] = y.astype(out_ref.dtype)


def network_forward(state, w0, w1, wr, b_slab, action=None, *, tile_b=1024):
    """state: [B, 110]. (w0, w1, wr, b_slab) from pack_params().
    Returns qs [B, 13] (float32), or the gathered q_acted if `action` given."""
    B = state.shape[0]
    cdt = w0.dtype
    # Caller-side cast only (no host-side padding): halves streamed input bytes
    # on the bf16 path and is a no-op on the f32 path.
    state = state.astype(cdt)

    # Batch tile: multiple of 8, large enough to amortize per-step overhead,
    # even number of grid steps (>= 2) whenever B allows so the batch axis can
    # split across both TensorCores on v7x.  cdiv grid + masked last block
    # replaces batch padding.
    if B <= 8:
        tb = 8
    else:
        n_tiles = max(2, _cdiv(B, tile_b))
        n_tiles += n_tiles & 1                     # even -> balanced across TCs
        tb = min(_round_up(_cdiv(B, n_tiles), 8), _round_up(B, 8))
    grid = (_cdiv(B, tb),)

    flops = 2 * B * (IN_SIZE * H1 + H1 * H2 + N_DEPTH * H2 * H2 + H2 * OUT_SIZE)
    w_bytes = sum(int(a.size) * a.dtype.itemsize for a in (w0, w1, wr, b_slab))
    bytes_accessed = int(w_bytes
                         + B * (IN_SIZE + OUT_P) * jnp.dtype(cdt).itemsize)

    qs_p = pl.pallas_call(
        _mlp_kernel,
        out_shape=jax.ShapeDtypeStruct((B, OUT_P), cdt),
        grid_spec=pltpu.PrefetchScalarGridSpec(
            num_scalar_prefetch=0,
            grid=grid,
            in_specs=[
                # Activations: one batch tile per step, unpadded 110-wide last
                # dim (== full array dim) -> no host pad copy, auto-pipelined.
                pl.BlockSpec((tb, IN_SIZE), lambda i: (i, 0)),
                # Packed weights / biases: constant block index -> DMA'd once,
                # VMEM-resident across all grid steps.
                pl.BlockSpec((IN_SIZE, H1_P), lambda i: (0, 0)),
                pl.BlockSpec((H1_P, H2_P), lambda i: (0, 0)),
                pl.BlockSpec((N_DEPTH + 1, H2_P, H2_P), lambda i: (0, 0, 0)),
                pl.BlockSpec((N_LAYERS, H1_P), lambda i: (0, 0)),
            ],
            # Lane-dense 128-wide output block (unmasked stores); dtype follows
            # the compute dtype so the bf16 path halves output HBM bytes.
            out_specs=pl.BlockSpec((tb, OUT_P), lambda i: (i, 0)),
        ),
        compiler_params=pltpu.CompilerParams(
            dimension_semantics=("parallel",),
        ),
        cost_estimate=pl.CostEstimate(flops=flops, transcendentals=0,
                                      bytes_accessed=bytes_accessed),
    )(state, w0, w1, wr, b_slab)

    qs = qs_p[:B, :OUT_SIZE].astype(jnp.float32)
    if action is None:
        return qs
    # torch.squeeze(qs.gather(1, action.long()))
    gathered = jnp.take_along_axis(qs, action.astype(jnp.int32), axis=1)
    return jnp.squeeze(gathered)


def init_params(key):
    """Init mirroring the PyTorch module: h1/h2 xavier_uniform (relu gain),
    h4 xavier_uniform (linear gain), the four h3 layers keep torch's default
    Linear init (kaiming-uniform a=sqrt(5) == U(-1/sqrt(fan_in), 1/sqrt(fan_in)));
    all biases use torch's default U(-1/sqrt(fan_in), 1/sqrt(fan_in)).
    Weights are built directly in [in, out] layout."""
    def xavier_uniform(k, fan_in, fan_out, gain):
        a = gain * jnp.sqrt(6.0 / (fan_in + fan_out))
        return jax.random.uniform(k, (fan_in, fan_out), jnp.float32, -a, a)

    def torch_default_weight(k, fan_in, fan_out):
        bound = 1.0 / jnp.sqrt(float(fan_in))
        return jax.random.uniform(k, (fan_in, fan_out), jnp.float32, -bound, bound)

    def torch_default_bias(k, fan_in, fan_out):
        bound = 1.0 / jnp.sqrt(float(fan_in))
        return jax.random.uniform(k, (1, fan_out), jnp.float32, -bound, bound)

    relu_gain = jnp.sqrt(2.0)
    keys = jax.random.split(key, 2 * N_LAYERS)
    k = iter(keys)

    params = []
    params.append((xavier_uniform(next(k), IN_SIZE, H1, relu_gain),
                   torch_default_bias(next(k), IN_SIZE, H1)))
    params.append((xavier_uniform(next(k), H1, H2, relu_gain),
                   torch_default_bias(next(k), H1, H2)))
    for _ in range(N_DEPTH):
        params.append((torch_default_weight(next(k), H2, H2),
                       torch_default_bias(next(k), H2, H2)))
    params.append((xavier_uniform(next(k), H2, OUT_SIZE, 1.0),
                   torch_default_bias(next(k), H2, OUT_SIZE)))
    return params


def pack_params(params, weight_dtype=jnp.bfloat16):
    """Pack the 7 (w, b) pairs into compact zero-padded slabs:
       w0 (110,256), w1 (256,128), wr (5,128,128) in `weight_dtype`,
       biases (7,256) float32 (bias add stays in the f32 accumulator)."""
    w0 = jnp.zeros((IN_SIZE, H1_P), jnp.float32).at[:, :H1].set(params[0][0])
    w1 = jnp.zeros((H1_P, H2_P), jnp.float32).at[:H1, :H2].set(params[1][0])
    wr = jnp.zeros((N_DEPTH + 1, H2_P, H2_P), jnp.float32)
    for i in range(N_DEPTH):
        wr = wr.at[i, :H2, :H2].set(params[2 + i][0])
    wr = wr.at[N_DEPTH, :H2, :OUT_SIZE].set(params[-1][0])

    b = jnp.zeros((N_LAYERS, H1_P), jnp.float32)
    for i, (_, bi) in enumerate(params):
        b = b.at[i, :bi.shape[-1]].set(bi.reshape(-1))

    return (w0.astype(weight_dtype), w1.astype(weight_dtype),
            wr.astype(weight_dtype), b)


def _reference_forward(state, params):
    """Pure-JAX reference for correctness checks."""
    x = state
    for i, (w, b) in enumerate(params):
        x = x @ w + b
        if i < len(params) - 1:
            x = jnp.maximum(x, 0.0)
    return x


if __name__ == "__main__":
    key = jax.random.PRNGKey(0)
    k_state, k_params, k_act, k_big = jax.random.split(key, 4)

    params = init_params(k_params)

    # --- f32 weights: strict check vs the pure-JAX reference (B=2) ---
    w0f, w1f, wrf, bf = pack_params(params, jnp.float32)

    B = 2
    state = jax.random.normal(k_state, (B, IN_SIZE), jnp.float32)
    qs = jax.block_until_ready(network_forward(state, w0f, w1f, wrf, bf))
    assert qs.shape == (B, OUT_SIZE)
    qs_ref = _reference_forward(state, params)
    assert jnp.allclose(qs, qs_ref, atol=2e-3, rtol=2e-3)

    # Action-gather path (plain-JAX glue around the kernel output).
    action = jax.random.randint(k_act, (B, 1), 0, OUT_SIZE)
    q_acted = jax.block_until_ready(
        network_forward(state, w0f, w1f, wrf, bf, action))
    assert q_acted.shape == (B,)
    assert jnp.allclose(q_acted,
                        jnp.squeeze(jnp.take_along_axis(qs_ref, action, axis=1)),
                        atol=2e-3, rtol=2e-3)

    # --- larger batch: exercises the multi-step parallel grid, no over-pad ---
    Bb = 1200
    big = jax.random.normal(k_big, (Bb, IN_SIZE), jnp.float32)
    qs_big = jax.block_until_ready(network_forward(big, w0f, w1f, wrf, bf))
    assert qs_big.shape == (Bb, OUT_SIZE)
    qs_big_ref = _reference_forward(big, params)
    assert jnp.allclose(qs_big, qs_big_ref, atol=2e-3, rtol=2e-3)

    # --- default bf16 path (halves streamed input/weight/output HBM bytes) ---
    w0h, w1h, wrh, bh = pack_params(params)        # bf16 weights, f32 biases
    qs16 = jax.block_until_ready(network_forward(big, w0h, w1h, wrh, bh))
    assert qs16.shape == (Bb, OUT_SIZE)
    assert bool(jnp.all(jnp.isfinite(qs16)))
    # Loose bound: bf16 operand rounding over 7 layers on O(1) activations.
    assert float(jnp.max(jnp.abs(qs16 - qs_big_ref))) < 0.25

    print("KERNEL_OK")
</pallas_src>

<mosaic_0001>
module attributes {stable_mosaic.version = 11 : i64} {
  func.func @_mlp_kernel(%arg0: i32, %arg1: memref<8x110xf32, #tpu.memory_space<vmem>>, %arg2: memref<110x256xf32, #tpu.memory_space<vmem>>, %arg3: memref<256x128xf32, #tpu.memory_space<vmem>>, %arg4: memref<5x128x128xf32, #tpu.memory_space<vmem>>, %arg5: memref<7x256xf32, #tpu.memory_space<vmem>>, %arg6: memref<8x128xf32, #tpu.memory_space<vmem>>) attributes {dimension_semantics = [#tpu.dimension_semantics<parallel>], iteration_bounds = array<i64: 1>, scalar_prefetch = 0 : i64, scratch_operands = 0 : i64, tpu.core_type = #tpu.core_type<tc>, window_params = [{transform_indices = @transform_0, window_bounds = array<i64: 8, 110>}, {pipeline_mode = #tpu.pipeline_mode<synchronous>, transform_indices = @transform_1, window_bounds = array<i64: 110, 256>}, {pipeline_mode = #tpu.pipeline_mode<synchronous>, transform_indices = @transform_2, window_bounds = array<i64: 256, 128>}, {pipeline_mode = #tpu.pipeline_mode<synchronous>, transform_indices = @transform_3, window_bounds = array<i64: 5, 128, 128>}, {pipeline_mode = #tpu.pipeline_mode<synchronous>, transform_indices = @transform_4, window_bounds = array<i64: 7, 256>}, {transform_indices = @transform_5, window_bounds = array<i64: 8, 128>}]} {
    %c0 = arith.constant 0 : index
    %c0_0 = arith.constant 0 : index
    %0 = vector.load %arg1[%c0, %c0_0] : memref<8x110xf32, #tpu.memory_space<vmem>>, vector<8x110xf32>
    %c0_1 = arith.constant 0 : index
    %c0_2 = arith.constant 0 : index
    %1 = vector.load %arg2[%c0_1, %c0_2] : memref<110x256xf32, #tpu.memory_space<vmem>>, vector<110x256xf32>
    %cst = arith.constant dense<0.000000e+00> : vector<8x256xf32>
    %2 = tpu.matmul %0, %1, %cst {dimension_numbers = #tpu.dot_dimension_numbers<[1], [0], [0], [1], [0, 0, 1, 1], [], []>} : vector<8x110xf32>, vector<110x256xf32>, vector<8x256xf32> -> vector<8x256xf32>
    %c0_3 = arith.constant 0 : index
    %c0_4 = arith.constant 0 : index
    %3 = vector.load %arg5[%c0_3, %c0_4] : memref<7x256xf32, #tpu.memory_space<vmem>>, vector<1x256xf32>
    %4 = vector.broadcast %3 : vector<1x256xf32> to vector<8x256xf32>
    %5 = arith.addf %2, %4 : vector<8x256xf32>
    %cst_5 = arith.constant 0.000000e+00 : f32
    %6 = vector.broadcast %cst_5 : f32 to vector<8x256xf32>
    %7 = arith.maximumf %5, %6 : vector<8x256xf32>
    %c0_6 = arith.constant 0 : index
    %c0_7 = arith.constant 0 : index
    %8 = vector.load %arg3[%c0_6, %c0_7] : memref<256x128xf32, #tpu.memory_space<vmem>>, vector<256x128xf32>
    %cst_8 = arith.constant dense<0.000000e+00> : vector<8x128xf32>
    %9 = tpu.matmul %7, %8, %cst_8 {dimension_numbers = #tpu.dot_dimension_numbers<[1], [0], [0], [1], [0, 0, 1, 1], [], []>} : vector<8x256xf32>, vector<256x128xf32>, vector<8x128xf32> -> vector<8x128xf32>
    %c1 = arith.constant 1 : index
    %c0_9 = arith.constant 0 : index
    %10 = vector.load %arg5[%c1, %c0_9] : memref<7x256xf32, #tpu.memory_space<vmem>>, vector<1x128xf32>
    %11 = vector.broadcast %10 : vector<1x128xf32> to vector<8x128xf32>
    %12 = arith.addf %9, %11 : vector<8x128xf32>
    %cst_10 = arith.constant 0.000000e+00 : f32
    %13 = vector.broadcast %cst_10 : f32 to vector<8x128xf32>
    %14 = arith.maximumf %12, %13 : vector<8x128xf32>
    %c0_11 = arith.constant 0 : index
    %c0_12 = arith.constant 0 : index
    %c0_13 = arith.constant 0 : index
    %15 = vector.load %arg4[%c0_11, %c0_12, %c0_13] : memref<5x128x128xf32, #tpu.memory_space<vmem>>, vector<1x128x128xf32>
    %16 = vector.shape_cast %15 : vector<1x128x128xf32> to vector<128x128xf32>
    %cst_14 = arith.constant dense<0.000000e+00> : vector<8x128xf32>
    %17 = tpu.matmul %14, %16, %cst_14 {dimension_numbers = #tpu.dot_dimension_numbers<[1], [0], [0], [1], [0, 0, 1, 1], [], []>} : vector<8x128xf32>, vector<128x128xf32>, vector<8x128xf32> -> vector<8x128xf32>
    %c2 = arith.constant 2 : index
    %c0_15 = arith.constant 0 : index
    %18 = vector.load %arg5[%c2, %c0_15] : memref<7x256xf32, #tpu.memory_space<vmem>>, vector<1x128xf32>
    %19 = vector.broadcast %18 : vector<1x128xf32> to vector<8x128xf32>
    %20 = arith.addf %17, %19 : vector<8x128xf32>
    %cst_16 = arith.constant 0.000000e+00 : f32
    %21 = vector.broadcast %cst_16 : f32 to vector<8x128xf32>
    %22 = arith.maximumf %20, %21 : vector<8x128xf32>
    %c1_17 = arith.constant 1 : index
    %c0_18 = arith.constant 0 : index
    %c0_19 = arith.constant 0 : index
    %23 = vector.load %arg4[%c1_17, %c0_18, %c0_19] : memref<5x128x128xf32, #tpu.memory_space<vmem>>, vector<1x128x128xf32>
    %24 = vector.shape_cast %23 : vector<1x128x128xf32> to vector<128x128xf32>
    %cst_20 = arith.constant dense<0.000000e+00> : vector<8x128xf32>
    %25 = tpu.matmul %22, %24, %cst_20 {dimension_numbers = #tpu.dot_dimension_numbers<[1], [0], [0], [1], [0, 0, 1, 1], [], []>} : vector<8x128xf32>, vector<128x128xf32>, vector<8x128xf32> -> vector<8x128xf32>
    %c3 = arith.constant 3 : index
    %c0_21 = arith.constant 0 : index
    %26 = vector.load %arg5[%c3, %c0_21] : memref<7x256xf32, #tpu.memory_space<vmem>>, vector<1x128xf32>
    %27 = vector.broadcast %26 : vector<1x128xf32> to vector<8x128xf32>
    %28 = arith.addf %25, %27 : vector<8x128xf32>
    %cst_22 = arith.constant 0.000000e+00 : f32
    %29 = vector.broadcast %cst_22 : f32 to vector<8x128xf32>
    %30 = arith.maximumf %28, %29 : vector<8x128xf32>
    %c2_23 = arith.constant 2 : index
    %c0_24 = arith.constant 0 : index
    %c0_25 = arith.constant 0 : index
    %31 = vector.load %arg4[%c2_23, %c0_24, %c0_25] : memref<5x128x128xf32, #tpu.memory_space<vmem>>, vector<1x128x128xf32>
    %32 = vector.shape_cast %31 : vector<1x128x128xf32> to vector<128x128xf32>
    %cst_26 = arith.constant dense<0.000000e+00> : vector<8x128xf32>
    %33 = tpu.matmul %30, %32, %cst_26 {dimension_numbers = #tpu.dot_dimension_numbers<[1], [0], [0], [1], [0, 0, 1, 1], [], []>} : vector<8x128xf32>, vector<128x128xf32>, vector<8x128xf32> -> vector<8x128xf32>
    %c4 = arith.constant 4 : index
    %c0_27 = arith.constant 0 : index
    %34 = vector.load %arg5[%c4, %c0_27] : memref<7x256xf32, #tpu.memory_space<vmem>>, vector<1x128xf32>
    %35 = vector.broadcast %34 : vector<1x128xf32> to vector<8x128xf32>
    %36 = arith.addf %33, %35 : vector<8x128xf32>
    %cst_28 = arith.constant 0.000000e+00 : f32
    %37 = vector.broadcast %cst_28 : f32 to vector<8x128xf32>
    %38 = arith.maximumf %36, %37 : vector<8x128xf32>
    %c3_29 = arith.constant 3 : index
    %c0_30 = arith.constant 0 : index
    %c0_31 = arith.constant 0 : index
    %39 = vector.load %arg4[%c3_29, %c0_30, %c0_31] : memref<5x128x128xf32, #tpu.memory_space<vmem>>, vector<1x128x128xf32>
    %40 = vector.shape_cast %39 : vector<1x128x128xf32> to vector<128x128xf32>
    %cst_32 = arith.constant dense<0.000000e+00> : vector<8x128xf32>
    %41 = tpu.matmul %38, %40, %cst_32 {dimension_numbers = #tpu.dot_dimension_numbers<[1], [0], [0], [1], [0, 0, 1, 1], [], []>} : vector<8x128xf32>, vector<128x128xf32>, vector<8x128xf32> -> vector<8x128xf32>
    %c5 = arith.constant 5 : index
    %c0_33 = arith.constant 0 : index
    %42 = vector.load %arg5[%c5, %c0_33] : memref<7x256xf32, #tpu.memory_space<vmem>>, vector<1x128xf32>
    %43 = vector.broadcast %42 : vector<1x128xf32> to vector<8x128xf32>
    %44 = arith.addf %41, %43 : vector<8x128xf32>
    %cst_34 = arith.constant 0.000000e+00 : f32
    %45 = vector.broadcast %cst_34 : f32 to vector<8x128xf32>
    %46 = arith.maximumf %44, %45 : vector<8x128xf32>
    %c4_35 = arith.constant 4 : index
    %c0_36 = arith.constant 0 : index
    %c0_37 = arith.constant 0 : index
    %47 = vector.load %arg4[%c4_35, %c0_36, %c0_37] : memref<5x128x128xf32, #tpu.memory_space<vmem>>, vector<1x128x128xf32>
    %48 = vector.shape_cast %47 : vector<1x128x128xf32> to vector<128x128xf32>
    %cst_38 = arith.constant dense<0.000000e+00> : vector<8x128xf32>
    %49 = tpu.matmul %46, %48, %cst_38 {dimension_numbers = #tpu.dot_dimension_numbers<[1], [0], [0], [1], [0, 0, 1, 1], [], []>} : vector<8x128xf32>, vector<128x128xf32>, vector<8x128xf32> -> vector<8x128xf32>
    %c6 = arith.constant 6 : index
    %c0_39 = arith.constant 0 : index
    %50 = vector.load %arg5[%c6, %c0_39] : memref<7x256xf32, #tpu.memory_space<vmem>>, vector<1x128xf32>
    %51 = vector.broadcast %50 : vector<1x128xf32> to vector<8x128xf32>
    %52 = arith.addf %49, %51 : vector<8x128xf32>
    %c0_40 = arith.constant 0 : index
    %c0_41 = arith.constant 0 : index
    %53 = vector.load %arg6[%c0_40, %c0_41] : memref<8x128xf32, #tpu.memory_space<vmem>>, vector<8x128xf32>
    tpu.vector_store %arg6[%c0_40, %c0_41], %52 {strides = array<i32>} : memref<8x128xf32, #tpu.memory_space<vmem>>, vector<8x128xf32>,
    return
  }
  func.func @transform_0(%arg0: i32) -> (i32, i32) {
    %c0_i32 = arith.constant 0 : i32
    %c0_i32_0 = arith.constant 0 : i32
    return %arg0, %c0_i32 : i32, i32
  }
  func.func @transform_1(%arg0: i32) -> (i32, i32) {
    %c0_i32 = arith.constant 0 : i32
    %c0_i32_0 = arith.constant 0 : i32
    %c0_i32_1 = arith.constant 0 : i32
    return %c0_i32, %c0_i32_0 : i32, i32
  }
  func.func @transform_2(%arg0: i32) -> (i32, i32) {
    %c0_i32 = arith.constant 0 : i32
    %c0_i32_0 = arith.constant 0 : i32
    %c0_i32_1 = arith.constant 0 : i32
    return %c0_i32, %c0_i32_0 : i32, i32
  }
  func.func @transform_3(%arg0: i32) -> (i32, i32, i32) {
    %c0_i32 = arith.constant 0 : i32
    %c0_i32_0 = arith.constant 0 : i32
    %c0_i32_1 = arith.constant 0 : i32
    %c0_i32_2 = arith.constant 0 : i32
    return %c0_i32, %c0_i32_0, %c0_i32_1 : i32, i32, i32
  }
  func.func @transform_4(%arg0: i32) -> (i32, i32) {
    %c0_i32 = arith.constant 0 : i32
    %c0_i32_0 = arith.constant 0 : i32
    %c0_i32_1 = arith.constant 0 : i32
    return %c0_i32, %c0_i32_0 : i32, i32
  }
  func.func @transform_5(%arg0: i32) -> (i32, i32) {
    %c0_i32 = arith.constant 0 : i32
    %c0_i32_0 = arith.constant 0 : i32
    return %arg0, %c0_i32 : i32, i32
  }
}

</mosaic_0001>

<llo_original>
// kernel: tpu_custom_call.1
$region0: #{tpu_custom_call.1}
  #allocation0 [shape = 'u32[]', space=smem, size = 0x4, offset = 0x4, fixed_abs, tag = 'smem constant byte address 0x4 - core index']
  #allocation1 [shape = 'u32[144,128]{1,0:T(1,128)}', space=vmem, size = 0x12000, scoped, tag = 'internal scratch']
  %s0 = inlined_call_operand.hbm [shape: f32[2,110], index: 0, kind: input, shape index: {}]
  %s1 = inlined_call_operand.hbm [shape: f32[110,256], index: 1, kind: input, shape index: {}]
  %s2 = inlined_call_operand.hbm [shape: f32[256,128], index: 2, kind: input, shape index: {}]
  %s3 = inlined_call_operand.hbm [shape: f32[5,128,128], index: 3, kind: input, shape index: {}]
  %s4 = inlined_call_operand.hbm [shape: f32[7,256], index: 4, kind: input, shape index: {}]
  %s5 = inlined_call_operand.hbm [shape: f32[2,128], index: 5, kind: output, shape index: {}]
  %s6 = sld [smem:[#allocation0]]
  $region50: #{tpu_custom_call.1} parent=0
    _
  %s8 = ssub.s32 1, %s6
  %s9 = scalar_select 0, %s8, %s6
  $region1: #{tpu_custom_call.1} parent=0
    #allocation2 [shape = 'u8[4096]{0}', space=vmem, size = 0x1000, scoped, tag = 'input window, operand 0, single buffered']
    #allocation3 [shape = 's32[1]{0}', space=sflag, size = 0x4, scoped, tag = 'scoped memory for tpu_custom_call.1']
    #allocation4 [shape = 's32[1]{0}', space=sflag, size = 0x4, scoped, tag = 'scoped memory for tpu_custom_call.1']
    #allocation5 [shape = 'u8[114688]{0}', space=vmem, size = 0x1c000, scoped, tag = 'input window, operand 1, single buffered']
    #allocation6 [shape = 's32[1]{0}', space=sflag, size = 0x4, scoped, tag = 'scoped memory for tpu_custom_call.1']
    #allocation7 [shape = 'u8[131072]{0}', space=vmem, size = 0x20000, scoped, tag = 'input window, operand 2, single buffered']
    #allocation8 [shape = 'u8[327680]{0}', space=vmem, size = 0x50000, scoped, tag = 'input window, operand 3, single buffered']
    #allocation9 [shape = 's32[1]{0}', space=sflag, size = 0x4, scoped, tag = 'scoped memory for tpu_custom_call.1']
    #allocation10 [shape = 'u8[8192]{0}', space=vmem, size = 0x2000, scoped, tag = 'input window, operand 4, single buffered']
    #allocation11 [shape = 'u8[4096]{0}', space=vmem, size = 0x1000, scoped, tag = 'output window, operand 0, single buffered']
    %10 = vsyncpa [#allocation3], 0
    %11 = vsyncpa [#allocation6], 0
    %12 = vsyncpa [#allocation9], 0
    %13 = vsyncpa [#allocation4], 0
    // Predicated region
    $region2: #{tpu_custom_call.1} parent=1 // pred_check
      _
    $region3: #{tpu_custom_call.1} parent=1 // pred_check_branch
      %15 = sbr.rel (0) target = $region5
    $region4: #{tpu_custom_call.1} parent=1 // pred_region
      %s17 = ssub.s32 128, 32
      %18 = vsyncadd [#allocation3], %s17
      %s19 = sshll.u32 [#allocation2], 4
      %s20 = int_to_ptr.vmem [resolvable:$true] %s19
      %25 = dma.hbm_to_vmem [thread:$0]  %s0, 32, %s20, [#allocation3], 32, 32, 2
    $region5: #{tpu_custom_call.1} parent=1 // pred_fallthru
      _
    // Predicated region
    $region6: #{tpu_custom_call.1} parent=1 // pred_check
      _
    $region7: #{tpu_custom_call.1} parent=1 // pred_check_branch
      %27 = sbr.rel (0) target = $region9
    $region8: #{tpu_custom_call.1} parent=1 // pred_region
      %s29 = ssub.s32 3584, 3584
      %30 = vsyncadd [#allocation6], %s29
      %s31 = sshll.u32 [#allocation5], 4
      %s32 = int_to_ptr.vmem [resolvable:$true] %s31
      %37 = dma.hbm_to_vmem [thread:$0]  %s1, 3584, %s32, [#allocation6], 256, 256, 16
    $region9: #{tpu_custom_call.1} parent=1 // pred_fallthru
      _
    // Predicated region
    $region10: #{tpu_custom_call.1} parent=1 // pred_check
      _
    $region11: #{tpu_custom_call.1} parent=1 // pred_check_branch
      %39 = sbr.rel (0) target = $region13
    $region12: #{tpu_custom_call.1} parent=1 // pred_region
      %s41 = ssub.s32 4096, 4096
      %42 = vsyncadd [#allocation6], %s41
      %s43 = sshll.u32 [#allocation7], 4
      %s44 = int_to_ptr.vmem [resolvable:$true] %s43
      %49 = dma.hbm_to_vmem [thread:$0]  %s2, 4096, %s44, [#allocation6], 128, 128, 8
    $region13: #{tpu_custom_call.1} parent=1 // pred_fallthru
      _
    // Predicated region
    $region14: #{tpu_custom_call.1} parent=1 // pred_check
      _
    $region15: #{tpu_custom_call.1} parent=1 // pred_check_branch
      %51 = sbr.rel (0) target = $region17
    $region16: #{tpu_custom_call.1} parent=1 // pred_region
      %s53 = ssub.s32 10240, 10240
      %54 = vsyncadd [#allocation9], %s53
      %s55 = sshll.u32 [#allocation8], 4
      %s56 = int_to_ptr.vmem [resolvable:$true] %s55
      %61 = dma.hbm_to_vmem [thread:$0]  %s3, 10240, %s56, [#allocation9], 128, 128, 8
    $region17: #{tpu_custom_call.1} parent=1 // pred_fallthru
      _
    // Predicated region
    $region18: #{tpu_custom_call.1} parent=1 // pred_check
      _
    $region19: #{tpu_custom_call.1} parent=1 // pred_check_branch
      %63 = sbr.rel (0) target = $region21
    $region20: #{tpu_custom_call.1} parent=1 // pred_region
      %s65 = ssub.s32 256, 256
      %66 = vsyncadd [#allocation9], %s65
      %s68 = sshll.u32 [#allocation10], 4
      %s69 = int_to_ptr.vmem [resolvable:$true] %s68
      %71 = dma.hbm_to_vmem [thread:$0]  %s4, 256, %s69, [#allocation9]
    $region21: #{tpu_custom_call.1} parent=1 // pred_fallthru
      _
    // Predicated region
    $region22: #{tpu_custom_call.1} parent=1 // pred_check
      _
    $region23: #{tpu_custom_call.1} parent=1 // pred_check_branch
      %73 = sbr.rel (0) target = $region25
    $region24: #{tpu_custom_call.1} parent=1 // pred_region
      %74 = dma.done [#allocation3], 128
    $region25: #{tpu_custom_call.1} parent=1 // pred_fallthru
      _
    // Predicated region
    $region26: #{tpu_custom_call.1} parent=1 // pred_check
      _
    $region27: #{tpu_custom_call.1} parent=1 // pred_check_branch
      %76 = sbr.rel (0) target = $region29
    $region28: #{tpu_custom_call.1} parent=1 // pred_region
      %77 = dma.done [#allocation6], 3584
    $region29: #{tpu_custom_call.1} parent=1 // pred_fallthru
      _
    // Predicated region
    $region30: #{tpu_custom_call.1} parent=1 // pred_check
      _
    $region31: #{tpu_custom_call.1} parent=1 // pred_check_branch
      %79 = sbr.rel (0) target = $region33
    $region32: #{tpu_custom_call.1} parent=1 // pred_region
      %80 = dma.done [#allocation6], 4096
    $region33: #{tpu_custom_call.1} parent=1 // pred_fallthru
      _
    // Predicated region
    $region34: #{tpu_custom_call.1} parent=1 // pred_check
      _
    $region35: #{tpu_custom_call.1} parent=1 // pred_check_branch
      %82 = sbr.rel (0) target = $region37
    $region36: #{tpu_custom_call.1} parent=1 // pred_region
      %83 = dma.done [#allocation9], 10240
    $region37: #{tpu_custom_call.1} parent=1 // pred_fallthru
      _
    // Predicated region
    $region38: #{tpu_custom_call.1} parent=1 // pred_check
      _
    $region39: #{tpu_custom_call.1} parent=1 // pred_check_branch
      %85 = sbr.rel (0) target = $region41
    $region40: #{tpu_custom_call.1} parent=1 // pred_region
      %86 = dma.done [#allocation9], 256
    $region41: #{tpu_custom_call.1} parent=1 // pred_fallthru
      _
    %v87 = vld [vmem:[#allocation2] sm:$0xff]
    %v88 = vld [vmem:[#allocation5] sm:$0xff]
    %v89 = vld [vmem:[#allocation5 + $0x8] sm:$0xff]
    %v90 = vld [vmem:[#allocation5 + $0x10] sm:$0xff]
    %v91 = vld [vmem:[#allocation5 + $0x18] sm:$0xff]
    %v92 = vld [vmem:[#allocation5 + $0x20] sm:$0xff]
    %v93 = vld [vmem:[#allocation5 + $0x28] sm:$0xff]
    %v94 = vld [vmem:[#allocation5 + $0x30] sm:$0xff]
    %v95 = vld [vmem:[#allocation5 + $0x38] sm:$0xff]
    %v96 = vld [vmem:[#allocation5 + $0x40] sm:$0xff]
    %v97 = vld [vmem:[#allocation5 + $0x48] sm:$0xff]
    %v98 = vld [vmem:[#allocation5 + $0x50] sm:$0xff]
    %v99 = vld [vmem:[#allocation5 + $0x58] sm:$0xff]
    %v100 = vld [vmem:[#allocation5 + $0x60] sm:$0xff]
    %v101 = vld [vmem:[#allocation5 + $0x68] sm:$0xff]
    %v102 = vld [vmem:[#allocation5 + $0x70] sm:$0xff]
    %v103 = vld [vmem:[#allocation5 + $0x78] sm:$0xff]
    %v104 = vld [vmem:[#allocation5 + $0x80] sm:$0xff]
    %v105 = vld [vmem:[#allocation5 + $0x88] sm:$0xff]
    %v106 = vld [vmem:[#allocation5 + $0x90] sm:$0xff]
    %v107 = vld [vmem:[#allocation5 + $0x98] sm:$0xff]
    %v108 = vld [vmem:[#allocation5 + $0xa0] sm:$0xff]
    %v109 = vld [vmem:[#allocation5 + $0xa8] sm:$0xff]
    %v110 = vld [vmem:[#allocation5 + $0xb0] sm:$0xff]
    %v111 = vld [vmem:[#allocation5 + $0xb8] sm:$0xff]
    %v112 = vld [vmem:[#allocation5 + $0xc0] sm:$0xff]
    %v113 = vld [vmem:[#allocation5 + $0xc8] sm:$0xff]
    %v114 = vld [vmem:[#allocation5 + $0xd0] sm:$0x3f]
    %v115 = vld [vmem:[#allocation5 + $0xd8] sm:$0x3f]
    %v116 = vld [vmem:[#allocation10] ss:$8 sm:$0x3]
    %v118 = vlaneseq
    %v119 = vshrl.u32 %v118, 7
    %v120 = vsub.s32 0, %v119
    %v121 = vrot.slane %v116, %v120
    %v122 = vlaneseq
    %v123 = vshrl.u32 %v122, 7
    %v124 = vsub.s32 1, %v123
    %v125 = vrot.slane %v116, %v124
    %vm128 = vcmask 900096
    %v130 = vsel %vm128, %v87, 0
    %vm132 = vcmask 1045504
    %v134 = vsel %vm132, %v114, 0
    %v137 = vsel %vm132, %v115, 0
    %139 = vmatprep.subr.mxu0 %v89
    %140 = vmatpush1.msra.mxu0 %v88
    %141 = vmatprep.subr.mxu0 %v91
    %142 = vmatpush1.msra.mxu0 %v90
    %143 = vmatprep.subr.mxu0 %v93
    %144 = vmatpush1.msra.mxu0 %v92
    %145 = vmatprep.subr.mxu0 %v95
    %146 = vmatpush1.msra.mxu0 %v94
    %147 = vmatprep.subr.mxu0 %v97
    %148 = vmatpush1.msra.mxu0 %v96
    %149 = vmatprep.subr.mxu0 %v99
    %150 = vmatpush1.msra.mxu0 %v98
    %151 = vmatprep.subr.mxu0 %v101
    %152 = vmatpush1.msra.mxu0 %v100
    %153 = vmatprep.subr.mxu0 %v103
    %154 = vmatpush1.msra.mxu0 %v102
    %155 = vmatprep.subr.mxu0 %v105
    %156 = vmatpush1.msra.mxu0 %v104
    %157 = vmatprep.subr.mxu0 %v107
    %158 = vmatpush1.msra.mxu0 %v106
    %159 = vmatprep.subr.mxu0 %v109
    %160 = vmatpush1.msra.mxu0 %v108
    %161 = vmatprep.subr.mxu0 %v111
    %162 = vmatpush1.msra.mxu0 %v110
    %163 = vmatprep.subr.mxu0 %v113
    %164 = vmatpush1.msra.mxu0 %v112
    %165 = vmatprep.subr.mxu0 %v137
    %166 = vmatpush1.msra.mxu0 %v134
    %167 = vmatprep.subr.mxu0 0.0
    %168 = vmatpush1.msra.mxu0 0.0
    %169 = vmatprep.subr.mxu0 0.0
    %170 = vmatpush1.msra.mxu0 0.0
    %171 = vmatprep.subr.mxu0 0.0
    %172 = vmatpush1.msra.mxu0 0.0
    %173 = vmatprep.subr.mxu0 0.0
    %174 = vmatpush1.msra.mxu0 0.0
    %175 = vmatprep.subr.mxu0 0.0
    %176 = vmatpush1.msra.mxu0 0.0
    %177 = vmatprep.subr.mxu0 0.0
    %178 = vmatpush1.msra.mxu0 0.0
    %179 = vmatprep.subr.mxu0 0.0
    %180 = vmatpush1.msra.mxu0 0.0
    %181 = vmatprep.subr.mxu0 0.0
    %182 = vmatpush1.msra.mxu0 0.0
    %183 = vmatprep.subr.mxu0 0.0
    %184 = vmatpush1.msra.mxu0 0.0
    %185 = vmatprep.subr.mxu0 0.0
    %186 = vmatpush1.msra.mxu0 0.0
    %187 = vmatprep.subr.mxu0 0.0
    %188 = vmatpush1.msra.mxu0 0.0
    %189 = vmatprep.subr.mxu0 0.0
    %190 = vmatpush1.msra.mxu0 0.0
    %191 = vmatprep.subr.mxu0 0.0
    %192 = vmatpush1.msra.mxu0 0.0
    %193 = vmatprep.subr.mxu0 0.0
    %194 = vmatpush1.msra.mxu0 0.0
    %195 = vmatprep.subr.mxu0 0.0
    %196 = vmatpush1.msra.mxu0 0.0
    %197 = vmatprep.subr.mxu0 0.0
    %198 = vmatpush1.msra.mxu0 0.0
    %199 = vmatprep.subr.mxu0 0.0
    %200 = vmatpush1.msra.mxu0 0.0
    %201 = vmatprep.subr.mxu0 0.0
    %202 = vmatpush1.msra.mxu0 0.0
    %203 = vmatprep.mubr.f32.mxu0 0.0
    %204 = vmatmul.mubr.f32.gmra.mrb[0].mxu0 %v130
    %v205 = vpop.f32.mrb[0].mxu0
    %v206 = vadd.f32 %v121, %v205
    %v207 = vpop.f32.mrb[0].mxu0
    %v208 = vadd.f32 %v125, %v207
    %209 = vdwg.mxu0
    %v210 = vmax.f32 %v206, 0.0
    %v211 = vmax.f32 %v208, 0.0
    %v212 = vld [vmem:[#allocation7] sm:$0xff]
    %v213 = vld [vmem:[#allocation7 + $0x8] sm:$0xff]
    %v214 = vld [vmem:[#allocation7 + $0x10] sm:$0xff]
    %v215 = vld [vmem:[#allocation7 + $0x18] sm:$0xff]
    %v216 = vld [vmem:[#allocation7 + $0x20] sm:$0xff]
    %v217 = vld [vmem:[#allocation7 + $0x28] sm:$0xff]
    %v218 = vld [vmem:[#allocation7 + $0x30] sm:$0xff]
    %v219 = vld [vmem:[#allocation7 + $0x38] sm:$0xff]
    %v220 = vld [vmem:[#allocation7 + $0x40] sm:$0xff]
    %v221 = vld [vmem:[#allocation7 + $0x48] sm:$0xff]
    %v222 = vld [vmem:[#allocation7 + $0x50] sm:$0xff]
    %v223 = vld [vmem:[#allocation7 + $0x58] sm:$0xff]
    %v224 = vld [vmem:[#allocation7 + $0x60] sm:$0xff]
    %v225 = vld [vmem:[#allocation7 + $0x68] sm:$0xff]
    %v226 = vld [vmem:[#allocation7 + $0x70] sm:$0xff]
    %v227 = vld [vmem:[#allocation7 + $0x78] sm:$0xff]
    %v228 = vld [vmem:[#allocation7 + $0x80] sm:$0xff]
    %v229 = vld [vmem:[#allocation7 + $0x88] sm:$0xff]
    %v230 = vld [vmem:[#allocation7 + $0x90] sm:$0xff]
    %v231 = vld [vmem:[#allocation7 + $0x98] sm:$0xff]
    %v232 = vld [vmem:[#allocation7 + $0xa0] sm:$0xff]
    %v233 = vld [vmem:[#allocation7 + $0xa8] sm:$0xff]
    %v234 = vld [vmem:[#allocation7 + $0xb0] sm:$0xff]
    %v235 = vld [vmem:[#allocation7 + $0xb8] sm:$0xff]
    %v236 = vld [vmem:[#allocation7 + $0xc0] sm:$0xff]
    %v237 = vld [vmem:[#allocation7 + $0xc8] sm:$0xff]
    %v238 = vld [vmem:[#allocation7 + $0xd0] sm:$0xff]
    %v239 = vld [vmem:[#allocation7 + $0xd8] sm:$0xff]
    %v240 = vld [vmem:[#allocation7 + $0xe0] sm:$0xff]
    %v241 = vld [vmem:[#allocation7 + $0xe8] sm:$0xff]
    %v242 = vld [vmem:[#allocation7 + $0xf0] sm:$0xff]
    %v243 = vld [vmem:[#allocation7 + $0xf8] sm:$0xff]
    %v244 = vld [vmem:[#allocation10 + $0x1] ss:$0 sm:$0xff]
    %245 = vmatprep.subr.mxu0 0.0
    %246 = vmatpush1.msra.mxu0 %v212
    %247 = vmatprep.subr.mxu0 0.0
    %248 = vmatpush1.msra.mxu0 %v213
    %249 = vmatprep.subr.mxu0 0.0
    %250 = vmatpush1.msra.mxu0 %v214
    %251 = vmatprep.subr.mxu0 0.0
    %252 = vmatpush1.msra.mxu0 %v215
    %253 = vmatprep.subr.mxu0 0.0
    %254 = vmatpush1.msra.mxu0 %v216
    %255 = vmatprep.subr.mxu0 0.0
    %256 = vmatpush1.msra.mxu0 %v217
    %257 = vmatprep.subr.mxu0 0.0
    %258 = vmatpush1.msra.mxu0 %v218
    %259 = vmatprep.subr.mxu0 0.0
    %260 = vmatpush1.msra.mxu0 %v219
    %261 = vmatprep.subr.mxu0 0.0
    %262 = vmatpush1.msra.mxu0 %v220
    %263 = vmatprep.subr.mxu0 0.0
    %264 = vmatpush1.msra.mxu0 %v221
    %265 = vmatprep.subr.mxu0 0.0
    %266 = vmatpush1.msra.mxu0 %v222
    %267 = vmatprep.subr.mxu0 0.0
    %268 = vmatpush1.msra.mxu0 %v223
    %269 = vmatprep.subr.mxu0 0.0
    %270 = vmatpush1.msra.mxu0 %v224
    %271 = vmatprep.subr.mxu0 0.0
    %272 = vmatpush1.msra.mxu0 %v225
    %273 = vmatprep.subr.mxu0 0.0
    %274 = vmatpush1.msra.mxu0 %v226
    %275 = vmatprep.subr.mxu0 0.0
    %276 = vmatpush1.msra.mxu0 %v227
    %277 = vmatprep.subr.mxu0 0.0
    %278 = vmatpush1.msra.mxu0 %v228
    %279 = vmatprep.subr.mxu0 0.0
    %280 = vmatpush1.msra.mxu0 %v229
    %281 = vmatprep.subr.mxu0 0.0
    %282 = vmatpush1.msra.mxu0 %v230
    %283 = vmatprep.subr.mxu0 0.0
    %284 = vmatpush1.msra.mxu0 %v231
    %285 = vmatprep.subr.mxu0 0.0
    %286 = vmatpush1.msra.mxu0 %v232
    %287 = vmatprep.subr.mxu0 0.0
    %288 = vmatpush1.msra.mxu0 %v233
    %289 = vmatprep.subr.mxu0 0.0
    %290 = vmatpush1.msra.mxu0 %v234
    %291 = vmatprep.subr.mxu0 0.0
    %292 = vmatpush1.msra.mxu0 %v235
    %293 = vmatprep.subr.mxu0 0.0
    %294 = vmatpush1.msra.mxu0 %v236
    %295 = vmatprep.subr.mxu0 0.0
    %296 = vmatpush1.msra.mxu0 %v237
    %297 = vmatprep.subr.mxu0 0.0
    %298 = vmatpush1.msra.mxu0 %v238
    %299 = vmatprep.subr.mxu0 0.0
    %300 = vmatpush1.msra.mxu0 %v239
    %301 = vmatprep.subr.mxu0 0.0
    %302 = vmatpush1.msra.mxu0 %v240
    %303 = vmatprep.subr.mxu0 0.0
    %304 = vmatpush1.msra.mxu0 %v241
    %305 = vmatprep.subr.mxu0 0.0
    %306 = vmatpush1.msra.mxu0 %v242
    %307 = vmatprep.subr.mxu0 0.0
    %308 = vmatpush1.msra.mxu0 %v243
    %309 = vmatprep.mubr.f32.mxu0 %v211
    %310 = vmatmul.mubr.f32.gmra.mrb[0].mxu0 %v210
    %v311 = vpop.f32.mrb[0].mxu0
    %v312 = vadd.f32 %v244, %v311
    %v313 = vpop.f32.mrb[0].mxu0
    %314 = vdwg.mxu0
    %v315 = vmax.f32 %v312, 0.0
    %v316 = vld [vmem:[#allocation8] sm:$0xff]
    %v317 = vld [vmem:[#allocation8 + $0x8] sm:$0xff]
    %v318 = vld [vmem:[#allocation8 + $0x10] sm:$0xff]
    %v319 = vld [vmem:[#allocation8 + $0x18] sm:$0xff]
    %v320 = vld [vmem:[#allocation8 + $0x20] sm:$0xff]
    %v321 = vld [vmem:[#allocation8 + $0x28] sm:$0xff]
    %v322 = vld [vmem:[#allocation8 + $0x30] sm:$0xff]
    %v323 = vld [vmem:[#allocation8 + $0x38] sm:$0xff]
    %v324 = vld [vmem:[#allocation8 + $0x40] sm:$0xff]
    %v325 = vld [vmem:[#allocation8 + $0x48] sm:$0xff]
    %v326 = vld [vmem:[#allocation8 + $0x50] sm:$0xff]
    %v327 = vld [vmem:[#allocation8 + $0x58] sm:$0xff]
    %v328 = vld [vmem:[#allocation8 + $0x60] sm:$0xff]
    %v329 = vld [vmem:[#allocation8 + $0x68] sm:$0xff]
    %v330 = vld [vmem:[#allocation8 + $0x70] sm:$0xff]
    %v331 = vld [vmem:[#allocation8 + $0x78] sm:$0xff]
    %v332 = vld [vmem:[#allocation10 + $0x2] ss:$0 sm:$0xff]
    %333 = vmatprep.subr.mxu0 0.0
    %334 = vmatpush1.msra.mxu0 %v316
    %335 = vmatprep.subr.mxu0 0.0
    %336 = vmatpush1.msra.mxu0 %v317
    %337 = vmatprep.subr.mxu0 0.0
    %338 = vmatpush1.msra.mxu0 %v318
    %339 = vmatprep.subr.mxu0 0.0
    %340 = vmatpush1.msra.mxu0 %v319
    %341 = vmatprep.subr.mxu0 0.0
    %342 = vmatpush1.msra.mxu0 %v320
    %343 = vmatprep.subr.mxu0 0.0
    %344 = vmatpush1.msra.mxu0 %v321
    %345 = vmatprep.subr.mxu0 0.0
    %346 = vmatpush1.msra.mxu0 %v322
    %347 = vmatprep.subr.mxu0 0.0
    %348 = vmatpush1.msra.mxu0 %v323
    %349 = vmatprep.subr.mxu0 0.0
    %350 = vmatpush1.msra.mxu0 %v324
    %351 = vmatprep.subr.mxu0 0.0
    %352 = vmatpush1.msra.mxu0 %v325
    %353 = vmatprep.subr.mxu0 0.0
    %354 = vmatpush1.msra.mxu0 %v326
    %355 = vmatprep.subr.mxu0 0.0
    %356 = vmatpush1.msra.mxu0 %v327
    %357 = vmatprep.subr.mxu0 0.0
    %358 = vmatpush1.msra.mxu0 %v328
    %359 = vmatprep.subr.mxu0 0.0
    %360 = vmatpush1.msra.mxu0 %v329
    %361 = vmatprep.subr.mxu0 0.0
    %362 = vmatpush1.msra.mxu0 %v330
    %363 = vmatprep.subr.mxu0 0.0
    %364 = vmatpush1.msra.mxu0 %v331
    %365 = vmatprep.subr.mxu0 0.0
    %366 = vmatpush1.msra.mxu0 0.0
    %367 = vmatprep.subr.mxu0 0.0
    %368 = vmatpush1.msra.mxu0 0.0
    %369 = vmatprep.subr.mxu0 0.0
    %370 = vmatpush1.msra.mxu0 0.0
    %371 = vmatprep.subr.mxu0 0.0
    %372 = vmatpush1.msra.mxu0 0.0
    %373 = vmatprep.subr.mxu0 0.0
    %374 = vmatpush1.msra.mxu0 0.0
    %375 = vmatprep.subr.mxu0 0.0
    %376 = vmatpush1.msra.mxu0 0.0
    %377 = vmatprep.subr.mxu0 0.0
    %378 = vmatpush1.msra.mxu0 0.0
    %379 = vmatprep.subr.mxu0 0.0
    %380 = vmatpush1.msra.mxu0 0.0
    %381 = vmatprep.subr.mxu0 0.0
    %382 = vmatpush1.msra.mxu0 0.0
    %383 = vmatprep.subr.mxu0 0.0
    %384 = vmatpush1.msra.mxu0 0.0
    %385 = vmatprep.subr.mxu0 0.0
    %386 = vmatpush1.msra.mxu0 0.0
    %387 = vmatprep.subr.mxu0 0.0
    %388 = vmatpush1.msra.mxu0 0.0
    %389 = vmatprep.subr.mxu0 0.0
    %390 = vmatpush1.msra.mxu0 0.0
    %391 = vmatprep.subr.mxu0 0.0
    %392 = vmatpush1.msra.mxu0 0.0
    %393 = vmatprep.subr.mxu0 0.0
    %394 = vmatpush1.msra.mxu0 0.0
    %395 = vmatprep.subr.mxu0 0.0
    %396 = vmatpush1.msra.mxu0 0.0
    %397 = vmatprep.mubr.f32.mxu0 0.0
    %398 = vmatmul.mubr.f32.gmra.mrb[0].mxu0 %v315
    %v399 = vpop.f32.mrb[0].mxu0
    %v400 = vadd.f32 %v332, %v399
    %v401 = vpop.f32.mrb[0].mxu0
    %402 = vdwg.mxu0
    %v403 = vmax.f32 %v400, 0.0
    %s404 = scalar_lea.vmem [#allocation8], 128
    %v405 = vld [vmem:[%s404] sm:$0xff]
    %v406 = vld [vmem:[%s404 + $0x8] sm:$0xff]
    %v407 = vld [vmem:[%s404 + $0x10] sm:$0xff]
    %v408 = vld [vmem:[%s404 + $0x18] sm:$0xff]
    %v409 = vld [vmem:[%s404 + $0x20] sm:$0xff]
    %v410 = vld [vmem:[%s404 + $0x28] sm:$0xff]
    %v411 = vld [vmem:[%s404 + $0x30] sm:$0xff]
    %v412 = vld [vmem:[%s404 + $0x38] sm:$0xff]
    %v413 = vld [vmem:[%s404 + $0x40] sm:$0xff]
    %v414 = vld [vmem:[%s404 + $0x48] sm:$0xff]
    %v415 = vld [vmem:[%s404 + $0x50] sm:$0xff]
    %v416 = vld [vmem:[%s404 + $0x58] sm:$0xff]
    %v417 = vld [vmem:[%s404 + $0x60] sm:$0xff]
    %v418 = vld [vmem:[%s404 + $0x68] sm:$0xff]
    %v419 = vld [vmem:[%s404 + $0x70] sm:$0xff]
    %v420 = vld [vmem:[%s404 + $0x78] sm:$0xff]
    %v421 = vld [vmem:[#allocation10 + $0x3] ss:$0 sm:$0xff]
    %422 = vmatprep.subr.mxu0 0.0
    %423 = vmatpush1.msra.mxu0 %v405
    %424 = vmatprep.subr.mxu0 0.0
    %425 = vmatpush1.msra.mxu0 %v406
    %426 = vmatprep.subr.mxu0 0.0
    %427 = vmatpush1.msra.mxu0 %v407
    %428 = vmatprep.subr.mxu0 0.0
    %429 = vmatpush1.msra.mxu0 %v408
    %430 = vmatprep.subr.mxu0 0.0
    %431 = vmatpush1.msra.mxu0 %v409
    %432 = vmatprep.subr.mxu0 0.0
    %433 = vmatpush1.msra.mxu0 %v410
    %434 = vmatprep.subr.mxu0 0.0
    %435 = vmatpush1.msra.mxu0 %v411
    %436 = vmatprep.subr.mxu0 0.0
    %437 = vmatpush1.msra.mxu0 %v412
    %438 = vmatprep.subr.mxu0 0.0
    %439 = vmatpush1.msra.mxu0 %v413
    %440 = vmatprep.subr.mxu0 0.0
    %441 = vmatpush1.msra.mxu0 %v414
    %442 = vmatprep.subr.mxu0 0.0
    %443 = vmatpush1.msra.mxu0 %v415
    %444 = vmatprep.subr.mxu0 0.0
    %445 = vmatpush1.msra.mxu0 %v416
    %446 = vmatprep.subr.mxu0 0.0
    %447 = vmatpush1.msra.mxu0 %v417
    %448 = vmatprep.subr.mxu0 0.0
    %449 = vmatpush1.msra.mxu0 %v418
    %450 = vmatprep.subr.mxu0 0.0
    %451 = vmatpush1.msra.mxu0 %v419
    %452 = vmatprep.subr.mxu0 0.0
    %453 = vmatpush1.msra.mxu0 %v420
    %454 = vmatprep.subr.mxu0 0.0
    %455 = vmatpush1.msra.mxu0 0.0
    %456 = vmatprep.subr.mxu0 0.0
    %457 = vmatpush1.msra.mxu0 0.0
    %458 = vmatprep.subr.mxu0 0.0
    %459 = vmatpush1.msra.mxu0 0.0
    %460 = vmatprep.subr.mxu0 0.0
    %461 = vmatpush1.msra.mxu0 0.0
    %462 = vmatprep.subr.mxu0 0.0
    %463 = vmatpush1.msra.mxu0 0.0
    %464 = vmatprep.subr.mxu0 0.0
    %465 = vmatpush1.msra.mxu0 0.0
    %466 = vmatprep.subr.mxu0 0.0
    %467 = vmatpush1.msra.mxu0 0.0
    %468 = vmatprep.subr.mxu0 0.0
    %469 = vmatpush1.msra.mxu0 0.0
    %470 = vmatprep.subr.mxu0 0.0
    %471 = vmatpush1.msra.mxu0 0.0
    %472 = vmatprep.subr.mxu0 0.0
    %473 = vmatpush1.msra.mxu0 0.0
    %474 = vmatprep.subr.mxu0 0.0
    %475 = vmatpush1.msra.mxu0 0.0
    %476 = vmatprep.subr.mxu0 0.0
    %477 = vmatpush1.msra.mxu0 0.0
    %478 = vmatprep.subr.mxu0 0.0
    %479 = vmatpush1.msra.mxu0 0.0
    %480 = vmatprep.subr.mxu0 0.0
    %481 = vmatpush1.msra.mxu0 0.0
    %482 = vmatprep.subr.mxu0 0.0
    %483 = vmatpush1.msra.mxu0 0.0
    %484 = vmatprep.subr.mxu0 0.0
    %485 = vmatpush1.msra.mxu0 0.0
    %486 = vmatprep.mubr.f32.mxu0 0.0
    %487 = vmatmul.mubr.f32.gmra.mrb[0].mxu0 %v403
    %v488 = vpop.f32.mrb[0].mxu0
    %v489 = vadd.f32 %v421, %v488
    %v490 = vpop.f32.mrb[0].mxu0
    %491 = vdwg.mxu0
    %v492 = vmax.f32 %v489, 0.0
    %s493 = scalar_lea.vmem [#allocation8], 256
    %v494 = vld [vmem:[%s493] sm:$0xff]
    %v495 = vld [vmem:[%s493 + $0x8] sm:$0xff]
    %v496 = vld [vmem:[%s493 + $0x10] sm:$0xff]
    %v497 = vld [vmem:[%s493 + $0x18] sm:$0xff]
    %v498 = vld [vmem:[%s493 + $0x20] sm:$0xff]
    %v499 = vld [vmem:[%s493 + $0x28] sm:$0xff]
    %v500 = vld [vmem:[%s493 + $0x30] sm:$0xff]
    %v501 = vld [vmem:[%s493 + $0x38] sm:$0xff]
    %v502 = vld [vmem:[%s493 + $0x40] sm:$0xff]
    %v503 = vld [vmem:[%s493 + $0x48] sm:$0xff]
    %v504 = vld [vmem:[%s493 + $0x50] sm:$0xff]
    %v505 = vld [vmem:[%s493 + $0x58] sm:$0xff]
    %v506 = vld [vmem:[%s493 + $0x60] sm:$0xff]
    %v507 = vld [vmem:[%s493 + $0x68] sm:$0xff]
    %v508 = vld [vmem:[%s493 + $0x70] sm:$0xff]
    %v509 = vld [vmem:[%s493 + $0x78] sm:$0xff]
    %v510 = vld [vmem:[#allocation10 + $0x4] ss:$0 sm:$0xff]
    %511 = vmatprep.subr.mxu0 0.0
    %512 = vmatpush1.msra.mxu0 %v494
    %513 = vmatprep.subr.mxu0 0.0
    %514 = vmatpush1.msra.mxu0 %v495
    %515 = vmatprep.subr.mxu0 0.0
    %516 = vmatpush1.msra.mxu0 %v496
    %517 = vmatprep.subr.mxu0 0.0
    %518 = vmatpush1.msra.mxu0 %v497
    %519 = vmatprep.subr.mxu0 0.0
    %520 = vmatpush1.msra.mxu0 %v498
    %521 = vmatprep.subr.mxu0 0.0
    %522 = vmatpush1.msra.mxu0 %v499
    %523 = vmatprep.subr.mxu0 0.0
    %524 = vmatpush1.msra.mxu0 %v500
    %525 = vmatprep.subr.mxu0 0.0
    %526 = vmatpush1.msra.mxu0 %v501
    %527 = vmatprep.subr.mxu0 0.0
    %528 = vmatpush1.msra.mxu0 %v502
    %529 = vmatprep.subr.mxu0 0.0
    %530 = vmatpush1.msra.mxu0 %v503
    %531 = vmatprep.subr.mxu0 0.0
    %532 = vmatpush1.msra.mxu0 %v504
    %533 = vmatprep.subr.mxu0 0.0
    %534 = vmatpush1.msra.mxu0 %v505
    %535 = vmatprep.subr.mxu0 0.0
    %536 = vmatpush1.msra.mxu0 %v506
    %537 = vmatprep.subr.mxu0 0.0
    %538 = vmatpush1.msra.mxu0 %v507
    %539 = vmatprep.subr.mxu0 0.0
    %540 = vmatpush1.msra.mxu0 %v508
    %541 = vmatprep.subr.mxu0 0.0
    %542 = vmatpush1.msra.mxu0 %v509
    %543 = vmatprep.subr.mxu0 0.0
    %544 = vmatpush1.msra.mxu0 0.0
    %545 = vmatprep.subr.mxu0 0.0
    %546 = vmatpush1.msra.mxu0 0.0
    %547 = vmatprep.subr.mxu0 0.0
    %548 = vmatpush1.msra.mxu0 0.0
    %549 = vmatprep.subr.mxu0 0.0
    %550 = vmatpush1.msra.mxu0 0.0
    %551 = vmatprep.subr.mxu0 0.0
    %552 = vmatpush1.msra.mxu0 0.0
    %553 = vmatprep.subr.mxu0 0.0
    %554 = vmatpush1.msra.mxu0 0.0
    %555 = vmatprep.subr.mxu0 0.0
    %556 = vmatpush1.msra.mxu0 0.0
    %557 = vmatprep.subr.mxu0 0.0
    %558 = vmatpush1.msra.mxu0 0.0
    %559 = vmatprep.subr.mxu0 0.0
    %560 = vmatpush1.msra.mxu0 0.0
    %561 = vmatprep.subr.mxu0 0.0
    %562 = vmatpush1.msra.mxu0 0.0
    %563 = vmatprep.subr.mxu0 0.0
    %564 = vmatpush1.msra.mxu0 0.0
    %565 = vmatprep.subr.mxu0 0.0
    %566 = vmatpush1.msra.mxu0 0.0
    %567 = vmatprep.subr.mxu0 0.0
    %568 = vmatpush1.msra.mxu0 0.0
    %569 = vmatprep.subr.mxu0 0.0
    %570 = vmatpush1.msra.mxu0 0.0
    %571 = vmatprep.subr.mxu0 0.0
    %572 = vmatpush1.msra.mxu0 0.0
    %573 = vmatprep.subr.mxu0 0.0
    %574 = vmatpush1.msra.mxu0 0.0
    %575 = vmatprep.mubr.f32.mxu0 0.0
    %576 = vmatmul.mubr.f32.gmra.mrb[0].mxu0 %v492
    %v577 = vpop.f32.mrb[0].mxu0
    %v578 = vadd.f32 %v510, %v577
    %v579 = vpop.f32.mrb[0].mxu0
    %580 = vdwg.mxu0
    %v581 = vmax.f32 %v578, 0.0
    %s582 = scalar_lea.vmem [#allocation8], 384
    %v583 = vld [vmem:[%s582] sm:$0xff]
    %v584 = vld [vmem:[%s582 + $0x8] sm:$0xff]
    %v585 = vld [vmem:[%s582 + $0x10] sm:$0xff]
    %v586 = vld [vmem:[%s582 + $0x18] sm:$0xff]
    %v587 = vld [vmem:[%s582 + $0x20] sm:$0xff]
    %v588 = vld [vmem:[%s582 + $0x28] sm:$0xff]
    %v589 = vld [vmem:[%s582 + $0x30] sm:$0xff]
    %v590 = vld [vmem:[%s582 + $0x38] sm:$0xff]
    %v591 = vld [vmem:[%s582 + $0x40] sm:$0xff]
    %v592 = vld [vmem:[%s582 + $0x48] sm:$0xff]
    %v593 = vld [vmem:[%s582 + $0x50] sm:$0xff]
    %v594 = vld [vmem:[%s582 + $0x58] sm:$0xff]
    %v595 = vld [vmem:[%s582 + $0x60] sm:$0xff]
    %v596 = vld [vmem:[%s582 + $0x68] sm:$0xff]
    %v597 = vld [vmem:[%s582 + $0x70] sm:$0xff]
    %v598 = vld [vmem:[%s582 + $0x78] sm:$0xff]
    %v599 = vld [vmem:[#allocation10 + $0x5] ss:$0 sm:$0xff]
    %600 = vmatprep.subr.mxu0 0.0
    %601 = vmatpush1.msra.mxu0 %v583
    %602 = vmatprep.subr.mxu0 0.0
    %603 = vmatpush1.msra.mxu0 %v584
    %604 = vmatprep.subr.mxu0 0.0
    %605 = vmatpush1.msra.mxu0 %v585
    %606 = vmatprep.subr.mxu0 0.0
    %607 = vmatpush1.msra.mxu0 %v586
    %608 = vmatprep.subr.mxu0 0.0
    %609 = vmatpush1.msra.mxu0 %v587
    %610 = vmatprep.subr.mxu0 0.0
    %611 = vmatpush1.msra.mxu0 %v588
    %612 = vmatprep.subr.mxu0 0.0
    %613 = vmatpush1.msra.mxu0 %v589
    %614 = vmatprep.subr.mxu0 0.0
    %615 = vmatpush1.msra.mxu0 %v590
    %616 = vmatprep.subr.mxu0 0.0
    %617 = vmatpush1.msra.mxu0 %v591
    %618 = vmatprep.subr.mxu0 0.0
    %619 = vmatpush1.msra.mxu0 %v592
    %620 = vmatprep.subr.mxu0 0.0
    %621 = vmatpush1.msra.mxu0 %v593
    %622 = vmatprep.subr.mxu0 0.0
    %623 = vmatpush1.msra.mxu0 %v594
    %624 = vmatprep.subr.mxu0 0.0
    %625 = vmatpush1.msra.mxu0 %v595
    %626 = vmatprep.subr.mxu0 0.0
    %627 = vmatpush1.msra.mxu0 %v596
    %628 = vmatprep.subr.mxu0 0.0
    %629 = vmatpush1.msra.mxu0 %v597
    %630 = vmatprep.subr.mxu0 0.0
    %631 = vmatpush1.msra.mxu0 %v598
    %632 = vmatprep.subr.mxu0 0.0
    %633 = vmatpush1.msra.mxu0 0.0
    %634 = vmatprep.subr.mxu0 0.0
    %635 = vmatpush1.msra.mxu0 0.0
    %636 = vmatprep.subr.mxu0 0.0
    %637 = vmatpush1.msra.mxu0 0.0
    %638 = vmatprep.subr.mxu0 0.0
    %639 = vmatpush1.msra.mxu0 0.0
    %640 = vmatprep.subr.mxu0 0.0
    %641 = vmatpush1.msra.mxu0 0.0
    %642 = vmatprep.subr.mxu0 0.0
    %643 = vmatpush1.msra.mxu0 0.0
    %644 = vmatprep.subr.mxu0 0.0
    %645 = vmatpush1.msra.mxu0 0.0
    %646 = vmatprep.subr.mxu0 0.0
    %647 = vmatpush1.msra.mxu0 0.0
    %648 = vmatprep.subr.mxu0 0.0
    %649 = vmatpush1.msra.mxu0 0.0
    %650 = vmatprep.subr.mxu0 0.0
    %651 = vmatpush1.msra.mxu0 0.0
    %652 = vmatprep.subr.mxu0 0.0
    %653 = vmatpush1.msra.mxu0 0.0
    %654 = vmatprep.subr.mxu0 0.0
    %655 = vmatpush1.msra.mxu0 0.0
    %656 = vmatprep.subr.mxu0 0.0
    %657 = vmatpush1.msra.mxu0 0.0
    %658 = vmatprep.subr.mxu0 0.0
    %659 = vmatpush1.msra.mxu0 0.0
    %660 = vmatprep.subr.mxu0 0.0
    %661 = vmatpush1.msra.mxu0 0.0
    %662 = vmatprep.subr.mxu0 0.0
    %663 = vmatpush1.msra.mxu0 0.0
    %664 = vmatprep.mubr.f32.mxu0 0.0
    %665 = vmatmul.mubr.f32.gmra.mrb[0].mxu0 %v581
    %v666 = vpop.f32.mrb[0].mxu0
    %v667 = vadd.f32 %v599, %v666
    %v668 = vpop.f32.mrb[0].mxu0
    %669 = vdwg.mxu0
    %v670 = vmax.f32 %v667, 0.0
    %s671 = scalar_lea.vmem [#allocation8], 512
    %v672 = vld [vmem:[%s671] sm:$0xff]
    %v673 = vld [vmem:[%s671 + $0x8] sm:$0xff]
    %v674 = vld [vmem:[%s671 + $0x10] sm:$0xff]
    %v675 = vld [vmem:[%s671 + $0x18] sm:$0xff]
    %v676 = vld [vmem:[%s671 + $0x20] sm:$0xff]
    %v677 = vld [vmem:[%s671 + $0x28] sm:$0xff]
    %v678 = vld [vmem:[%s671 + $0x30] sm:$0xff]
    %v679 = vld [vmem:[%s671 + $0x38] sm:$0xff]
    %v680 = vld [vmem:[%s671 + $0x40] sm:$0xff]
    %v681 = vld [vmem:[%s671 + $0x48] sm:$0xff]
    %v682 = vld [vmem:[%s671 + $0x50] sm:$0xff]
    %v683 = vld [vmem:[%s671 + $0x58] sm:$0xff]
    %v684 = vld [vmem:[%s671 + $0x60] sm:$0xff]
    %v685 = vld [vmem:[%s671 + $0x68] sm:$0xff]
    %v686 = vld [vmem:[%s671 + $0x70] sm:$0xff]
    %v687 = vld [vmem:[%s671 + $0x78] sm:$0xff]
    %v688 = vld [vmem:[#allocation10 + $0x6] ss:$0 sm:$0xff]
    %689 = vmatprep.subr.mxu0 0.0
    %690 = vmatpush1.msra.mxu0 %v672
    %691 = vmatprep.subr.mxu0 0.0
    %692 = vmatpush1.msra.mxu0 %v673
    %693 = vmatprep.subr.mxu0 0.0
    %694 = vmatpush1.msra.mxu0 %v674
    %695 = vmatprep.subr.mxu0 0.0
    %696 = vmatpush1.msra.mxu0 %v675
    %697 = vmatprep.subr.mxu0 0.0
    %698 = vmatpush1.msra.mxu0 %v676
    %699 = vmatprep.subr.mxu0 0.0
    %700 = vmatpush1.msra.mxu0 %v677
    %701 = vmatprep.subr.mxu0 0.0
    %702 = vmatpush1.msra.mxu0 %v678
    %703 = vmatprep.subr.mxu0 0.0
    %704 = vmatpush1.msra.mxu0 %v679
    %705 = vmatprep.subr.mxu0 0.0
    %706 = vmatpush1.msra.mxu0 %v680
    %707 = vmatprep.subr.mxu0 0.0
    %708 = vmatpush1.msra.mxu0 %v681
    %709 = vmatprep.subr.mxu0 0.0
    %710 = vmatpush1.msra.mxu0 %v682
    %711 = vmatprep.subr.mxu0 0.0
    %712 = vmatpush1.msra.mxu0 %v683
    %713 = vmatprep.subr.mxu0 0.0
    %714 = vmatpush1.msra.mxu0 %v684
    %715 = vmatprep.subr.mxu0 0.0
    %716 = vmatpush1.msra.mxu0 %v685
    %717 = vmatprep.subr.mxu0 0.0
    %718 = vmatpush1.msra.mxu0 %v686
    %719 = vmatprep.subr.mxu0 0.0
    %720 = vmatpush1.msra.mxu0 %v687
    %721 = vmatprep.subr.mxu0 0.0
    %722 = vmatpush1.msra.mxu0 0.0
    %723 = vmatprep.subr.mxu0 0.0
    %724 = vmatpush1.msra.mxu0 0.0
    %725 = vmatprep.subr.mxu0 0.0
    %726 = vmatpush1.msra.mxu0 0.0
    %727 = vmatprep.subr.mxu0 0.0
    %728 = vmatpush1.msra.mxu0 0.0
    %729 = vmatprep.subr.mxu0 0.0
    %730 = vmatpush1.msra.mxu0 0.0
    %731 = vmatprep.subr.mxu0 0.0
    %732 = vmatpush1.msra.mxu0 0.0
    %733 = vmatprep.subr.mxu0 0.0
    %734 = vmatpush1.msra.mxu0 0.0
    %735 = vmatprep.subr.mxu0 0.0
    %736 = vmatpush1.msra.mxu0 0.0
    %737 = vmatprep.subr.mxu0 0.0
    %738 = vmatpush1.msra.mxu0 0.0
    %739 = vmatprep.subr.mxu0 0.0
    %740 = vmatpush1.msra.mxu0 0.0
    %741 = vmatprep.subr.mxu0 0.0
    %742 = vmatpush1.msra.mxu0 0.0
    %743 = vmatprep.subr.mxu0 0.0
    %744 = vmatpush1.msra.mxu0 0.0
    %745 = vmatprep.subr.mxu0 0.0
    %746 = vmatpush1.msra.mxu0 0.0
    %747 = vmatprep.subr.mxu0 0.0
    %748 = vmatpush1.msra.mxu0 0.0
    %749 = vmatprep.subr.mxu0 0.0
    %750 = vmatpush1.msra.mxu0 0.0
    %751 = vmatprep.subr.mxu0 0.0
    %752 = vmatpush1.msra.mxu0 0.0
    %753 = vmatprep.mubr.f32.mxu0 0.0
    %754 = vmatmul.mubr.f32.gmra.mrb[0].mxu0 %v670
    %v755 = vpop.f32.mrb[0].mxu0
    %v756 = vadd.f32 %v688, %v755
    %v757 = vpop.f32.mrb[0].mxu0
    %758 = vdwg.mxu0
    %759 = vst [vmem:[#allocation11] sm:$0xff] %v756
    // Predicated region
    $region42: #{tpu_custom_call.1} parent=1 // pred_check
      _
    $region43: #{tpu_custom_call.1} parent=1 // pred_check_branch
      %761 = sbr.rel (0) target = $region45
    $region44: #{tpu_custom_call.1} parent=1 // pred_region
      %s763 = ssub.s32 128, 32
      %764 = vsyncadd [#allocation4], %s763
      %s765 = sshll.u32 [#allocation11], 4
      %s766 = int_to_ptr.vmem [resolvable:$true] %s765
      %771 = dma.vmem_to_hbm [thread:$0]  %s766, 32, %s5, [#allocation4], 32, 32, 2
    $region45: #{tpu_custom_call.1} parent=1 // pred_fallthru
      _
    // Predicated region
    $region46: #{tpu_custom_call.1} parent=1 // pred_check
      _
    $region47: #{tpu_custom_call.1} parent=1 // pred_check_branch
      %773 = sbr.rel (0) target = $region49
    $region48: #{tpu_custom_call.1} parent=1 // pred_region
      %774 = dma.done [#allocation4], 128
    $region49: #{tpu_custom_call.1} parent=1 // pred_fallthru
      _
    %775 = vsyncpa [#allocation3], 1
    %776 = vsyncpa [#allocation6], 1
    %777 = vsyncpa [#allocation9], 1
    %778 = vsyncpa [#allocation4], 1

</llo_original>
